<compile_context>
chip_gen: v6e
topology: v6e:2x2x1
jax: 0.10.0
libtpu: 0.0.40
codegen_flags: <defaults>
</compile_context>

<pallas_src>
import jax
import jax.numpy as jnp
from jax import lax
from jax.experimental import pallas as pl
from jax.experimental.pallas import tpu as pltpu

K = 3            # Conv1d kernel size
PAD = 1          # 'same' padding
BATCH_BLOCK = 8  # max batch rows per grid step (toy size fits in one step)


def resnet_conv1d_kernel(x_ref, w_ref, b_ref, o_ref):
    """One batch tile:  o = conv1d(x, w, padding=1) + b + x.

    x_ref: (Bt, C, L)  VMEM block
    w_ref: (C*C*K,)    SMEM, PyTorch (out, in, k) row-major flattened
    b_ref: (C,)        SMEM
    o_ref: (Bt, C, L)  VMEM block (aliases x's HBM buffer)
    """
    bt, c_ch, ll = x_ref.shape
    x = x_ref[...].astype(jnp.float32)            # explicit f32 math (v5e-safe)

    # Shifted taps with zero boundaries, built in-register (no HBM padding).
    zcol = jnp.zeros((bt, c_ch, 1), jnp.float32)
    x_prev = jnp.concatenate([zcol, x[:, :, : ll - 1]], axis=-1)   # x[l-1]
    x_next = jnp.concatenate([x[:, :, 1:], zcol], axis=-1)         # x[l+1]
    taps = (x_prev, x, x_next)

    # Hoist the C_in*K unique tap rows out of the output-channel loop so each
    # cross-sublane extraction is traced once, not once per output channel.
    tap_rows = [[taps[k][:, c, :] for k in range(K)] for c in range(c_ch)]

    rows = []
    for o in range(c_ch):
        # accumulator starts from residual + bias (no explicit zero fill)
        acc = x[:, o, :] + b_ref[o]                                # (Bt, L)
        for c in range(c_ch):
            row_ck = tap_rows[c]
            for k in range(K):
                # scalar weight from SMEM -> VPU broadcast-multiply-add
                acc = acc + w_ref[o * c_ch * K + c * K + k] * row_ck[k]
        rows.append(acc[:, None, :])
    # Single full-tile store (v5e-friendly); on v6e/v7x per-channel stores
    # would trade this small concat for 4 cheap stores.
    o_ref[...] = jnp.concatenate(rows, axis=1).astype(o_ref.dtype)


def resnet_forward(x, w, b):
    """x: (B, C, L); w: (C, C, K) PyTorch Conv1d layout; b: (C,).

    Returns conv1d(x, w, padding=1) + b + x in one batch-tiled pallas_call.
    Wrap the call site in jax.jit(..., donate_argnums=0) to realize the
    in-place (input_output_aliases) HBM reuse.
    """
    bsz, c_ch, length = x.shape
    c_out, c_in, k_sz = w.shape
    # Residual (+ expand_as-as-identity) requires matching channel counts, and
    # the flat SMEM indexing assumes PyTorch (out, in, k) row-major layout.
    assert (c_out, c_in, k_sz) == (c_ch, c_ch, K), "wrapped Conv1d must be (C, C, 3)"

    bt = min(bsz, BATCH_BLOCK)
    assert bsz % bt == 0, "batch must divide the batch tile"
    grid = (bsz // bt,)

    w_flat = w.reshape(-1).astype(jnp.float32)
    return pl.pallas_call(
        resnet_conv1d_kernel,
        out_shape=jax.ShapeDtypeStruct((bsz, c_ch, length), x.dtype),
        grid=grid,
        in_specs=[
            pl.BlockSpec((bt, c_ch, length), lambda i: (i, 0, 0)),   # x tile (VMEM)
            pl.BlockSpec(memory_space=pltpu.MemorySpace.SMEM),       # weights
            pl.BlockSpec(memory_space=pltpu.MemorySpace.SMEM),       # bias
        ],
        out_specs=pl.BlockSpec((bt, c_ch, length), lambda i: (i, 0, 0)),
        compiler_params=pltpu.CompilerParams(
            dimension_semantics=("parallel",)),
        input_output_aliases={0: 0},   # output reuses x's HBM buffer
    )(x, w_flat, b.astype(jnp.float32))


def reference(x, w, b):
    """Pure-JAX reference: Conv1d(padding=1) + bias + residual."""
    y = lax.conv_general_dilated(
        x, w,
        window_strides=(1,),
        padding=((PAD, PAD),),
        dimension_numbers=("NCH", "OIH", "NCH"),
    )
    return y + b[None, :, None] + x


if __name__ == "__main__":
    B, C, L = 2, 4, 16   # small shapes consistent with the module's forward
    key = jax.random.PRNGKey(0)
    kx, kw, kb = jax.random.split(key, 3)
    x = jax.random.normal(kx, (B, C, L), dtype=jnp.float32)
    # deterministic synthetic Conv1d parameters (not a checkpoint load)
    w = jax.random.normal(kw, (C, C, K), dtype=jnp.float32) * 0.2
    b = jax.random.normal(kb, (C,), dtype=jnp.float32) * 0.1

    # Reference is computed first so the kernel's aliased output (which may
    # reuse x's buffer when callers donate x) can never affect the check.
    ref = reference(x, w, b)
    out = jax.block_until_ready(resnet_forward(x, w, b))

    assert out.shape == (B, C, L)
    assert jnp.allclose(out, ref, atol=1e-5, rtol=1e-5), "mismatch vs reference"
    print("KERNEL_OK")
</pallas_src>

<mosaic_0001>
module attributes {stable_mosaic.version = 11 : i64} {
  func.func @resnet_conv1d_kernel(%arg0: i32, %arg1: memref<2x4x16xf32, #tpu.memory_space<vmem>>, %arg2: memref<48xf32, #tpu.memory_space<smem>>, %arg3: memref<4xf32, #tpu.memory_space<smem>>, %arg4: memref<2x4x16xf32, #tpu.memory_space<vmem>>) attributes {dimension_semantics = [#tpu.dimension_semantics<parallel>], iteration_bounds = array<i64: 1>, scalar_prefetch = 0 : i64, scratch_operands = 0 : i64, tpu.core_type = #tpu.core_type<tc>, window_params = [{transform_indices = @transform_0, window_bounds = array<i64: 2, 4, 16>}, {transform_indices = @transform_1, window_bounds = array<i64: 48>}, {transform_indices = @transform_2, window_bounds = array<i64: 4>}, {transform_indices = @transform_3, window_bounds = array<i64: 2, 4, 16>}]} {
    %c0 = arith.constant 0 : index
    %c0_0 = arith.constant 0 : index
    %c0_1 = arith.constant 0 : index
    %0 = vector.load %arg1[%c0, %c0_0, %c0_1] : memref<2x4x16xf32, #tpu.memory_space<vmem>>, vector<2x4x16xf32>
    %cst = arith.constant 0.000000e+00 : f32
    %1 = vector.broadcast %cst : f32 to vector<2x4x1xf32>
    %2 = vector.extract_strided_slice %0 {offsets = [0, 0, 0], sizes = [2, 4, 15], strides = [1, 1, 1]} : vector<2x4x16xf32> to vector<2x4x15xf32>
    %3 = tpu.concatenate %1, %2 in 2 : vector<2x4x1xf32>, vector<2x4x15xf32> -> vector<2x4x16xf32>
    %4 = vector.extract_strided_slice %0 {offsets = [0, 0, 1], sizes = [2, 4, 15], strides = [1, 1, 1]} : vector<2x4x16xf32> to vector<2x4x15xf32>
    %5 = tpu.concatenate %4, %1 in 2 : vector<2x4x15xf32>, vector<2x4x1xf32> -> vector<2x4x16xf32>
    %6 = vector.extract_strided_slice %3 {offsets = [0, 0, 0], sizes = [2, 1, 16], strides = [1, 1, 1]} : vector<2x4x16xf32> to vector<2x1x16xf32>
    %7 = vector.shape_cast %6 : vector<2x1x16xf32> to vector<2x16xf32>
    %8 = vector.extract_strided_slice %0 {offsets = [0, 0, 0], sizes = [2, 1, 16], strides = [1, 1, 1]} : vector<2x4x16xf32> to vector<2x1x16xf32>
    %9 = vector.shape_cast %8 : vector<2x1x16xf32> to vector<2x16xf32>
    %10 = vector.extract_strided_slice %5 {offsets = [0, 0, 0], sizes = [2, 1, 16], strides = [1, 1, 1]} : vector<2x4x16xf32> to vector<2x1x16xf32>
    %11 = vector.shape_cast %10 : vector<2x1x16xf32> to vector<2x16xf32>
    %12 = vector.extract_strided_slice %3 {offsets = [0, 1, 0], sizes = [2, 1, 16], strides = [1, 1, 1]} : vector<2x4x16xf32> to vector<2x1x16xf32>
    %13 = vector.shape_cast %12 : vector<2x1x16xf32> to vector<2x16xf32>
    %14 = vector.extract_strided_slice %0 {offsets = [0, 1, 0], sizes = [2, 1, 16], strides = [1, 1, 1]} : vector<2x4x16xf32> to vector<2x1x16xf32>
    %15 = vector.shape_cast %14 : vector<2x1x16xf32> to vector<2x16xf32>
    %16 = vector.extract_strided_slice %5 {offsets = [0, 1, 0], sizes = [2, 1, 16], strides = [1, 1, 1]} : vector<2x4x16xf32> to vector<2x1x16xf32>
    %17 = vector.shape_cast %16 : vector<2x1x16xf32> to vector<2x16xf32>
    %18 = vector.extract_strided_slice %3 {offsets = [0, 2, 0], sizes = [2, 1, 16], strides = [1, 1, 1]} : vector<2x4x16xf32> to vector<2x1x16xf32>
    %19 = vector.shape_cast %18 : vector<2x1x16xf32> to vector<2x16xf32>
    %20 = vector.extract_strided_slice %0 {offsets = [0, 2, 0], sizes = [2, 1, 16], strides = [1, 1, 1]} : vector<2x4x16xf32> to vector<2x1x16xf32>
    %21 = vector.shape_cast %20 : vector<2x1x16xf32> to vector<2x16xf32>
    %22 = vector.extract_strided_slice %5 {offsets = [0, 2, 0], sizes = [2, 1, 16], strides = [1, 1, 1]} : vector<2x4x16xf32> to vector<2x1x16xf32>
    %23 = vector.shape_cast %22 : vector<2x1x16xf32> to vector<2x16xf32>
    %24 = vector.extract_strided_slice %3 {offsets = [0, 3, 0], sizes = [2, 1, 16], strides = [1, 1, 1]} : vector<2x4x16xf32> to vector<2x1x16xf32>
    %25 = vector.shape_cast %24 : vector<2x1x16xf32> to vector<2x16xf32>
    %26 = vector.extract_strided_slice %0 {offsets = [0, 3, 0], sizes = [2, 1, 16], strides = [1, 1, 1]} : vector<2x4x16xf32> to vector<2x1x16xf32>
    %27 = vector.shape_cast %26 : vector<2x1x16xf32> to vector<2x16xf32>
    %28 = vector.extract_strided_slice %5 {offsets = [0, 3, 0], sizes = [2, 1, 16], strides = [1, 1, 1]} : vector<2x4x16xf32> to vector<2x1x16xf32>
    %29 = vector.shape_cast %28 : vector<2x1x16xf32> to vector<2x16xf32>
    %30 = vector.extract_strided_slice %0 {offsets = [0, 0, 0], sizes = [2, 1, 16], strides = [1, 1, 1]} : vector<2x4x16xf32> to vector<2x1x16xf32>
    %31 = vector.shape_cast %30 : vector<2x1x16xf32> to vector<2x16xf32>
    %c0_2 = arith.constant 0 : index
    %32 = memref.load %arg3[%c0_2] : memref<4xf32, #tpu.memory_space<smem>>
    %33 = vector.broadcast %32 : f32 to vector<2x16xf32>
    %34 = arith.addf %31, %33 : vector<2x16xf32>
    %c0_3 = arith.constant 0 : index
    %35 = memref.load %arg2[%c0_3] : memref<48xf32, #tpu.memory_space<smem>>
    %36 = vector.broadcast %35 : f32 to vector<2x16xf32>
    %37 = arith.mulf %36, %7 : vector<2x16xf32>
    %38 = arith.addf %34, %37 : vector<2x16xf32>
    %c1 = arith.constant 1 : index
    %39 = memref.load %arg2[%c1] : memref<48xf32, #tpu.memory_space<smem>>
    %40 = vector.broadcast %39 : f32 to vector<2x16xf32>
    %41 = arith.mulf %40, %9 : vector<2x16xf32>
    %42 = arith.addf %38, %41 : vector<2x16xf32>
    %c2 = arith.constant 2 : index
    %43 = memref.load %arg2[%c2] : memref<48xf32, #tpu.memory_space<smem>>
    %44 = vector.broadcast %43 : f32 to vector<2x16xf32>
    %45 = arith.mulf %44, %11 : vector<2x16xf32>
    %46 = arith.addf %42, %45 : vector<2x16xf32>
    %c3 = arith.constant 3 : index
    %47 = memref.load %arg2[%c3] : memref<48xf32, #tpu.memory_space<smem>>
    %48 = vector.broadcast %47 : f32 to vector<2x16xf32>
    %49 = arith.mulf %48, %13 : vector<2x16xf32>
    %50 = arith.addf %46, %49 : vector<2x16xf32>
    %c4 = arith.constant 4 : index
    %51 = memref.load %arg2[%c4] : memref<48xf32, #tpu.memory_space<smem>>
    %52 = vector.broadcast %51 : f32 to vector<2x16xf32>
    %53 = arith.mulf %52, %15 : vector<2x16xf32>
    %54 = arith.addf %50, %53 : vector<2x16xf32>
    %c5 = arith.constant 5 : index
    %55 = memref.load %arg2[%c5] : memref<48xf32, #tpu.memory_space<smem>>
    %56 = vector.broadcast %55 : f32 to vector<2x16xf32>
    %57 = arith.mulf %56, %17 : vector<2x16xf32>
    %58 = arith.addf %54, %57 : vector<2x16xf32>
    %c6 = arith.constant 6 : index
    %59 = memref.load %arg2[%c6] : memref<48xf32, #tpu.memory_space<smem>>
    %60 = vector.broadcast %59 : f32 to vector<2x16xf32>
    %61 = arith.mulf %60, %19 : vector<2x16xf32>
    %62 = arith.addf %58, %61 : vector<2x16xf32>
    %c7 = arith.constant 7 : index
    %63 = memref.load %arg2[%c7] : memref<48xf32, #tpu.memory_space<smem>>
    %64 = vector.broadcast %63 : f32 to vector<2x16xf32>
    %65 = arith.mulf %64, %21 : vector<2x16xf32>
    %66 = arith.addf %62, %65 : vector<2x16xf32>
    %c8 = arith.constant 8 : index
    %67 = memref.load %arg2[%c8] : memref<48xf32, #tpu.memory_space<smem>>
    %68 = vector.broadcast %67 : f32 to vector<2x16xf32>
    %69 = arith.mulf %68, %23 : vector<2x16xf32>
    %70 = arith.addf %66, %69 : vector<2x16xf32>
    %c9 = arith.constant 9 : index
    %71 = memref.load %arg2[%c9] : memref<48xf32, #tpu.memory_space<smem>>
    %72 = vector.broadcast %71 : f32 to vector<2x16xf32>
    %73 = arith.mulf %72, %25 : vector<2x16xf32>
    %74 = arith.addf %70, %73 : vector<2x16xf32>
    %c10 = arith.constant 10 : index
    %75 = memref.load %arg2[%c10] : memref<48xf32, #tpu.memory_space<smem>>
    %76 = vector.broadcast %75 : f32 to vector<2x16xf32>
    %77 = arith.mulf %76, %27 : vector<2x16xf32>
    %78 = arith.addf %74, %77 : vector<2x16xf32>
    %c11 = arith.constant 11 : index
    %79 = memref.load %arg2[%c11] : memref<48xf32, #tpu.memory_space<smem>>
    %80 = vector.broadcast %79 : f32 to vector<2x16xf32>
    %81 = arith.mulf %80, %29 : vector<2x16xf32>
    %82 = arith.addf %78, %81 : vector<2x16xf32>
    %83 = vector.shape_cast %82 : vector<2x16xf32> to vector<2x1x16xf32>
    %84 = vector.extract_strided_slice %0 {offsets = [0, 1, 0], sizes = [2, 1, 16], strides = [1, 1, 1]} : vector<2x4x16xf32> to vector<2x1x16xf32>
    %85 = vector.shape_cast %84 : vector<2x1x16xf32> to vector<2x16xf32>
    %c1_4 = arith.constant 1 : index
    %86 = memref.load %arg3[%c1_4] : memref<4xf32, #tpu.memory_space<smem>>
    %87 = vector.broadcast %86 : f32 to vector<2x16xf32>
    %88 = arith.addf %85, %87 : vector<2x16xf32>
    %c12 = arith.constant 12 : index
    %89 = memref.load %arg2[%c12] : memref<48xf32, #tpu.memory_space<smem>>
    %90 = vector.broadcast %89 : f32 to vector<2x16xf32>
    %91 = arith.mulf %90, %7 : vector<2x16xf32>
    %92 = arith.addf %88, %91 : vector<2x16xf32>
    %c13 = arith.constant 13 : index
    %93 = memref.load %arg2[%c13] : memref<48xf32, #tpu.memory_space<smem>>
    %94 = vector.broadcast %93 : f32 to vector<2x16xf32>
    %95 = arith.mulf %94, %9 : vector<2x16xf32>
    %96 = arith.addf %92, %95 : vector<2x16xf32>
    %c14 = arith.constant 14 : index
    %97 = memref.load %arg2[%c14] : memref<48xf32, #tpu.memory_space<smem>>
    %98 = vector.broadcast %97 : f32 to vector<2x16xf32>
    %99 = arith.mulf %98, %11 : vector<2x16xf32>
    %100 = arith.addf %96, %99 : vector<2x16xf32>
    %c15 = arith.constant 15 : index
    %101 = memref.load %arg2[%c15] : memref<48xf32, #tpu.memory_space<smem>>
    %102 = vector.broadcast %101 : f32 to vector<2x16xf32>
    %103 = arith.mulf %102, %13 : vector<2x16xf32>
    %104 = arith.addf %100, %103 : vector<2x16xf32>
    %c16 = arith.constant 16 : index
    %105 = memref.load %arg2[%c16] : memref<48xf32, #tpu.memory_space<smem>>
    %106 = vector.broadcast %105 : f32 to vector<2x16xf32>
    %107 = arith.mulf %106, %15 : vector<2x16xf32>
    %108 = arith.addf %104, %107 : vector<2x16xf32>
    %c17 = arith.constant 17 : index
    %109 = memref.load %arg2[%c17] : memref<48xf32, #tpu.memory_space<smem>>
    %110 = vector.broadcast %109 : f32 to vector<2x16xf32>
    %111 = arith.mulf %110, %17 : vector<2x16xf32>
    %112 = arith.addf %108, %111 : vector<2x16xf32>
    %c18 = arith.constant 18 : index
    %113 = memref.load %arg2[%c18] : memref<48xf32, #tpu.memory_space<smem>>
    %114 = vector.broadcast %113 : f32 to vector<2x16xf32>
    %115 = arith.mulf %114, %19 : vector<2x16xf32>
    %116 = arith.addf %112, %115 : vector<2x16xf32>
    %c19 = arith.constant 19 : index
    %117 = memref.load %arg2[%c19] : memref<48xf32, #tpu.memory_space<smem>>
    %118 = vector.broadcast %117 : f32 to vector<2x16xf32>
    %119 = arith.mulf %118, %21 : vector<2x16xf32>
    %120 = arith.addf %116, %119 : vector<2x16xf32>
    %c20 = arith.constant 20 : index
    %121 = memref.load %arg2[%c20] : memref<48xf32, #tpu.memory_space<smem>>
    %122 = vector.broadcast %121 : f32 to vector<2x16xf32>
    %123 = arith.mulf %122, %23 : vector<2x16xf32>
    %124 = arith.addf %120, %123 : vector<2x16xf32>
    %c21 = arith.constant 21 : index
    %125 = memref.load %arg2[%c21] : memref<48xf32, #tpu.memory_space<smem>>
    %126 = vector.broadcast %125 : f32 to vector<2x16xf32>
    %127 = arith.mulf %126, %25 : vector<2x16xf32>
    %128 = arith.addf %124, %127 : vector<2x16xf32>
    %c22 = arith.constant 22 : index
    %129 = memref.load %arg2[%c22] : memref<48xf32, #tpu.memory_space<smem>>
    %130 = vector.broadcast %129 : f32 to vector<2x16xf32>
    %131 = arith.mulf %130, %27 : vector<2x16xf32>
    %132 = arith.addf %128, %131 : vector<2x16xf32>
    %c23 = arith.constant 23 : index
    %133 = memref.load %arg2[%c23] : memref<48xf32, #tpu.memory_space<smem>>
    %134 = vector.broadcast %133 : f32 to vector<2x16xf32>
    %135 = arith.mulf %134, %29 : vector<2x16xf32>
    %136 = arith.addf %132, %135 : vector<2x16xf32>
    %137 = vector.shape_cast %136 : vector<2x16xf32> to vector<2x1x16xf32>
    %138 = vector.extract_strided_slice %0 {offsets = [0, 2, 0], sizes = [2, 1, 16], strides = [1, 1, 1]} : vector<2x4x16xf32> to vector<2x1x16xf32>
    %139 = vector.shape_cast %138 : vector<2x1x16xf32> to vector<2x16xf32>
    %c2_5 = arith.constant 2 : index
    %140 = memref.load %arg3[%c2_5] : memref<4xf32, #tpu.memory_space<smem>>
    %141 = vector.broadcast %140 : f32 to vector<2x16xf32>
    %142 = arith.addf %139, %141 : vector<2x16xf32>
    %c24 = arith.constant 24 : index
    %143 = memref.load %arg2[%c24] : memref<48xf32, #tpu.memory_space<smem>>
    %144 = vector.broadcast %143 : f32 to vector<2x16xf32>
    %145 = arith.mulf %144, %7 : vector<2x16xf32>
    %146 = arith.addf %142, %145 : vector<2x16xf32>
    %c25 = arith.constant 25 : index
    %147 = memref.load %arg2[%c25] : memref<48xf32, #tpu.memory_space<smem>>
    %148 = vector.broadcast %147 : f32 to vector<2x16xf32>
    %149 = arith.mulf %148, %9 : vector<2x16xf32>
    %150 = arith.addf %146, %149 : vector<2x16xf32>
    %c26 = arith.constant 26 : index
    %151 = memref.load %arg2[%c26] : memref<48xf32, #tpu.memory_space<smem>>
    %152 = vector.broadcast %151 : f32 to vector<2x16xf32>
    %153 = arith.mulf %152, %11 : vector<2x16xf32>
    %154 = arith.addf %150, %153 : vector<2x16xf32>
    %c27 = arith.constant 27 : index
    %155 = memref.load %arg2[%c27] : memref<48xf32, #tpu.memory_space<smem>>
    %156 = vector.broadcast %155 : f32 to vector<2x16xf32>
    %157 = arith.mulf %156, %13 : vector<2x16xf32>
    %158 = arith.addf %154, %157 : vector<2x16xf32>
    %c28 = arith.constant 28 : index
    %159 = memref.load %arg2[%c28] : memref<48xf32, #tpu.memory_space<smem>>
    %160 = vector.broadcast %159 : f32 to vector<2x16xf32>
    %161 = arith.mulf %160, %15 : vector<2x16xf32>
    %162 = arith.addf %158, %161 : vector<2x16xf32>
    %c29 = arith.constant 29 : index
    %163 = memref.load %arg2[%c29] : memref<48xf32, #tpu.memory_space<smem>>
    %164 = vector.broadcast %163 : f32 to vector<2x16xf32>
    %165 = arith.mulf %164, %17 : vector<2x16xf32>
    %166 = arith.addf %162, %165 : vector<2x16xf32>
    %c30 = arith.constant 30 : index
    %167 = memref.load %arg2[%c30] : memref<48xf32, #tpu.memory_space<smem>>
    %168 = vector.broadcast %167 : f32 to vector<2x16xf32>
    %169 = arith.mulf %168, %19 : vector<2x16xf32>
    %170 = arith.addf %166, %169 : vector<2x16xf32>
    %c31 = arith.constant 31 : index
    %171 = memref.load %arg2[%c31] : memref<48xf32, #tpu.memory_space<smem>>
    %172 = vector.broadcast %171 : f32 to vector<2x16xf32>
    %173 = arith.mulf %172, %21 : vector<2x16xf32>
    %174 = arith.addf %170, %173 : vector<2x16xf32>
    %c32 = arith.constant 32 : index
    %175 = memref.load %arg2[%c32] : memref<48xf32, #tpu.memory_space<smem>>
    %176 = vector.broadcast %175 : f32 to vector<2x16xf32>
    %177 = arith.mulf %176, %23 : vector<2x16xf32>
    %178 = arith.addf %174, %177 : vector<2x16xf32>
    %c33 = arith.constant 33 : index
    %179 = memref.load %arg2[%c33] : memref<48xf32, #tpu.memory_space<smem>>
    %180 = vector.broadcast %179 : f32 to vector<2x16xf32>
    %181 = arith.mulf %180, %25 : vector<2x16xf32>
    %182 = arith.addf %178, %181 : vector<2x16xf32>
    %c34 = arith.constant 34 : index
    %183 = memref.load %arg2[%c34] : memref<48xf32, #tpu.memory_space<smem>>
    %184 = vector.broadcast %183 : f32 to vector<2x16xf32>
    %185 = arith.mulf %184, %27 : vector<2x16xf32>
    %186 = arith.addf %182, %185 : vector<2x16xf32>
    %c35 = arith.constant 35 : index
    %187 = memref.load %arg2[%c35] : memref<48xf32, #tpu.memory_space<smem>>
    %188 = vector.broadcast %187 : f32 to vector<2x16xf32>
    %189 = arith.mulf %188, %29 : vector<2x16xf32>
    %190 = arith.addf %186, %189 : vector<2x16xf32>
    %191 = vector.shape_cast %190 : vector<2x16xf32> to vector<2x1x16xf32>
    %192 = vector.extract_strided_slice %0 {offsets = [0, 3, 0], sizes = [2, 1, 16], strides = [1, 1, 1]} : vector<2x4x16xf32> to vector<2x1x16xf32>
    %193 = vector.shape_cast %192 : vector<2x1x16xf32> to vector<2x16xf32>
    %c3_6 = arith.constant 3 : index
    %194 = memref.load %arg3[%c3_6] : memref<4xf32, #tpu.memory_space<smem>>
    %195 = vector.broadcast %194 : f32 to vector<2x16xf32>
    %196 = arith.addf %193, %195 : vector<2x16xf32>
    %c36 = arith.constant 36 : index
    %197 = memref.load %arg2[%c36] : memref<48xf32, #tpu.memory_space<smem>>
    %198 = vector.broadcast %197 : f32 to vector<2x16xf32>
    %199 = arith.mulf %198, %7 : vector<2x16xf32>
    %200 = arith.addf %196, %199 : vector<2x16xf32>
    %c37 = arith.constant 37 : index
    %201 = memref.load %arg2[%c37] : memref<48xf32, #tpu.memory_space<smem>>
    %202 = vector.broadcast %201 : f32 to vector<2x16xf32>
    %203 = arith.mulf %202, %9 : vector<2x16xf32>
    %204 = arith.addf %200, %203 : vector<2x16xf32>
    %c38 = arith.constant 38 : index
    %205 = memref.load %arg2[%c38] : memref<48xf32, #tpu.memory_space<smem>>
    %206 = vector.broadcast %205 : f32 to vector<2x16xf32>
    %207 = arith.mulf %206, %11 : vector<2x16xf32>
    %208 = arith.addf %204, %207 : vector<2x16xf32>
    %c39 = arith.constant 39 : index
    %209 = memref.load %arg2[%c39] : memref<48xf32, #tpu.memory_space<smem>>
    %210 = vector.broadcast %209 : f32 to vector<2x16xf32>
    %211 = arith.mulf %210, %13 : vector<2x16xf32>
    %212 = arith.addf %208, %211 : vector<2x16xf32>
    %c40 = arith.constant 40 : index
    %213 = memref.load %arg2[%c40] : memref<48xf32, #tpu.memory_space<smem>>
    %214 = vector.broadcast %213 : f32 to vector<2x16xf32>
    %215 = arith.mulf %214, %15 : vector<2x16xf32>
    %216 = arith.addf %212, %215 : vector<2x16xf32>
    %c41 = arith.constant 41 : index
    %217 = memref.load %arg2[%c41] : memref<48xf32, #tpu.memory_space<smem>>
    %218 = vector.broadcast %217 : f32 to vector<2x16xf32>
    %219 = arith.mulf %218, %17 : vector<2x16xf32>
    %220 = arith.addf %216, %219 : vector<2x16xf32>
    %c42 = arith.constant 42 : index
    %221 = memref.load %arg2[%c42] : memref<48xf32, #tpu.memory_space<smem>>
    %222 = vector.broadcast %221 : f32 to vector<2x16xf32>
    %223 = arith.mulf %222, %19 : vector<2x16xf32>
    %224 = arith.addf %220, %223 : vector<2x16xf32>
    %c43 = arith.constant 43 : index
    %225 = memref.load %arg2[%c43] : memref<48xf32, #tpu.memory_space<smem>>
    %226 = vector.broadcast %225 : f32 to vector<2x16xf32>
    %227 = arith.mulf %226, %21 : vector<2x16xf32>
    %228 = arith.addf %224, %227 : vector<2x16xf32>
    %c44 = arith.constant 44 : index
    %229 = memref.load %arg2[%c44] : memref<48xf32, #tpu.memory_space<smem>>
    %230 = vector.broadcast %229 : f32 to vector<2x16xf32>
    %231 = arith.mulf %230, %23 : vector<2x16xf32>
    %232 = arith.addf %228, %231 : vector<2x16xf32>
    %c45 = arith.constant 45 : index
    %233 = memref.load %arg2[%c45] : memref<48xf32, #tpu.memory_space<smem>>
    %234 = vector.broadcast %233 : f32 to vector<2x16xf32>
    %235 = arith.mulf %234, %25 : vector<2x16xf32>
    %236 = arith.addf %232, %235 : vector<2x16xf32>
    %c46 = arith.constant 46 : index
    %237 = memref.load %arg2[%c46] : memref<48xf32, #tpu.memory_space<smem>>
    %238 = vector.broadcast %237 : f32 to vector<2x16xf32>
    %239 = arith.mulf %238, %27 : vector<2x16xf32>
    %240 = arith.addf %236, %239 : vector<2x16xf32>
    %c47 = arith.constant 47 : index
    %241 = memref.load %arg2[%c47] : memref<48xf32, #tpu.memory_space<smem>>
    %242 = vector.broadcast %241 : f32 to vector<2x16xf32>
    %243 = arith.mulf %242, %29 : vector<2x16xf32>
    %244 = arith.addf %240, %243 : vector<2x16xf32>
    %245 = vector.shape_cast %244 : vector<2x16xf32> to vector<2x1x16xf32>
    %246 = tpu.concatenate %83, %137, %191, %245 in 1 : vector<2x1x16xf32>, vector<2x1x16xf32>, vector<2x1x16xf32>, vector<2x1x16xf32> -> vector<2x4x16xf32>
    %c0_7 = arith.constant 0 : index
    %c0_8 = arith.constant 0 : index
    %c0_9 = arith.constant 0 : index
    %247 = vector.load %arg4[%c0_7, %c0_8, %c0_9] : memref<2x4x16xf32, #tpu.memory_space<vmem>>, vector<2x4x16xf32>
    tpu.vector_store %arg4[%c0_7, %c0_8, %c0_9], %246 {strides = array<i32>} : memref<2x4x16xf32, #tpu.memory_space<vmem>>, vector<2x4x16xf32>,
    return
  }
  func.func @transform_0(%arg0: i32) -> (i32, i32, i32) {
    %c0_i32 = arith.constant 0 : i32
    %c0_i32_0 = arith.constant 0 : i32
    %c0_i32_1 = arith.constant 0 : i32
    return %arg0, %c0_i32, %c0_i32_0 : i32, i32, i32
  }
  func.func @transform_1(%arg0: i32) -> i32 {
    %c0_i32 = arith.constant 0 : i32
    %c0_i32_0 = arith.constant 0 : i32
    return %c0_i32 : i32
  }
  func.func @transform_2(%arg0: i32) -> i32 {
    %c0_i32 = arith.constant 0 : i32
    %c0_i32_0 = arith.constant 0 : i32
    return %c0_i32 : i32
  }
  func.func @transform_3(%arg0: i32) -> (i32, i32, i32) {
    %c0_i32 = arith.constant 0 : i32
    %c0_i32_0 = arith.constant 0 : i32
    %c0_i32_1 = arith.constant 0 : i32
    return %arg0, %c0_i32, %c0_i32_0 : i32, i32, i32
  }
}

</mosaic_0001>

<llo_original>
// kernel: tpu_custom_call.1
$region0: #{tpu_custom_call.1}
  #allocation0 [shape = 'u32[]', space=smem, size = 0x4, offset = 0x4, fixed_abs, tag = 'smem constant byte address 0x4 - core index']
  #allocation1 [shape = 'u32[144,128]{1,0:T(1,128)}', space=vmem, size = 0x12000, scoped, tag = 'internal scratch']
  %s0 = inlined_call_operand.hbm [shape: f32[2,4,16], index: 0, kind: input, shape index: {}, may-alias: {0,3}]
  %s1 = inlined_call_operand.vmem [shape: f32[48], index: 1, kind: input, shape index: {}]
  %s2 = inlined_call_operand.vmem [shape: f32[4], index: 2, kind: input, shape index: {}]
  %s3 = inlined_call_operand.hbm [shape: f32[2,4,16], index: 3, kind: output, shape index: {}, may-alias: {0,3}]
  %s4 = sld [smem:[#allocation0]]
  $region34: #{tpu_custom_call.1} parent=0
    _
  %s6 = ssub.s32 1, %s4
  %s7 = scalar_select 0, %s6, %s4
  $region1: #{tpu_custom_call.1} parent=0
    #allocation2 [shape = 'u8[4096]{0}', space=vmem, size = 0x1000, scoped, tag = 'input window, operand 0, single buffered']
    #allocation3 [shape = 's32[1]{0}', space=sflag, size = 0x4, scoped, tag = 'scoped memory for tpu_custom_call.1']
    #allocation4 [shape = 's32[1]{0}', space=sflag, size = 0x4, scoped, tag = 'scoped memory for tpu_custom_call.1']
    #allocation5 [shape = 's32[1]{0}', space=sflag, size = 0x4, scoped, tag = 'scoped memory for tpu_custom_call.1']
    #allocation6 [shape = 'u8[512]{0}', space=smem, size = 0x200, scoped, tag = 'input window, operand 1, single buffered']
    #allocation7 [shape = 'u8[512]{0}', space=smem, size = 0x200, scoped, tag = 'input window, operand 2, single buffered']
    #allocation8 [shape = 's32[1]{0}', space=sflag, size = 0x4, scoped, tag = 'scoped memory for tpu_custom_call.1']
    #allocation9 [shape = 'u8[4096]{0}', space=vmem, size = 0x1000, scoped, tag = 'output window, operand 0, single buffered']
    %8 = vsyncpa [#allocation3], 0
    %9 = vsyncpa [#allocation5], 0
    %10 = vsyncpa [#allocation8], 0
    %11 = vsyncpa [#allocation4], 0
    // Predicated region
    $region2: #{tpu_custom_call.1} parent=1 // pred_check
      _
    $region3: #{tpu_custom_call.1} parent=1 // pred_check_branch
      %13 = sbr.rel (0) target = $region5
    $region4: #{tpu_custom_call.1} parent=1 // pred_region
      %s15 = ssub.s32 128, 128
      %16 = vsyncadd [#allocation3], %s15
      %s17 = sshll.u32 [#allocation2], 4
      %s18 = int_to_ptr.vmem [resolvable:$true] %s17
      %23 = dma.hbm_to_vmem [thread:$0]  %s0, 128, %s18, [#allocation3], 64, 64, 4
    $region5: #{tpu_custom_call.1} parent=1 // pred_fallthru
      _
    // Predicated region
    $region6: #{tpu_custom_call.1} parent=1 // pred_check
      _
    $region7: #{tpu_custom_call.1} parent=1 // pred_check_branch
      %25 = sbr.rel (0) target = $region9
    $region8: #{tpu_custom_call.1} parent=1 // pred_region
      %s27 = ssub.s32 16, 16
      %28 = vsyncadd [#allocation5], %s27
      %s30 = sshll.u32 %s1, 4
      %s31 = int_to_ptr.vmem [resolvable:$true] %s30
      %33 = dma.vmem_to_smem %s31, 16, [#allocation6], [#allocation5]
    $region9: #{tpu_custom_call.1} parent=1 // pred_fallthru
      _
    // Predicated region
    $region10: #{tpu_custom_call.1} parent=1 // pred_check
      _
    $region11: #{tpu_custom_call.1} parent=1 // pred_check_branch
      %35 = sbr.rel (0) target = $region13
    $region12: #{tpu_custom_call.1} parent=1 // pred_region
      %s37 = ssub.s32 16, 16
      %38 = vsyncadd [#allocation8], %s37
      %s40 = sshll.u32 %s2, 4
      %s41 = int_to_ptr.vmem [resolvable:$true] %s40
      %43 = dma.vmem_to_smem %s41, 16, [#allocation7], [#allocation8]
    $region13: #{tpu_custom_call.1} parent=1 // pred_fallthru
      _
    // Predicated region
    $region14: #{tpu_custom_call.1} parent=1 // pred_check
      _
    $region15: #{tpu_custom_call.1} parent=1 // pred_check_branch
      %45 = sbr.rel (0) target = $region17
    $region16: #{tpu_custom_call.1} parent=1 // pred_region
      %46 = dma.done [#allocation3], 128
    $region17: #{tpu_custom_call.1} parent=1 // pred_fallthru
      _
    // Predicated region
    $region18: #{tpu_custom_call.1} parent=1 // pred_check
      _
    $region19: #{tpu_custom_call.1} parent=1 // pred_check_branch
      %48 = sbr.rel (0) target = $region21
    $region20: #{tpu_custom_call.1} parent=1 // pred_region
      %49 = dma.done [#allocation5], 16
    $region21: #{tpu_custom_call.1} parent=1 // pred_fallthru
      _
    // Predicated region
    $region22: #{tpu_custom_call.1} parent=1 // pred_check
      _
    $region23: #{tpu_custom_call.1} parent=1 // pred_check_branch
      %51 = sbr.rel (0) target = $region25
    $region24: #{tpu_custom_call.1} parent=1 // pred_region
      %52 = dma.done [#allocation8], 16
    $region25: #{tpu_custom_call.1} parent=1 // pred_fallthru
      _
    %53 = sfence
    %v54 = vld [vmem:[#allocation2] sm:$0xf]
    %v55 = vld [vmem:[#allocation2 + $0x4] sm:$0xf]
    %58 = vrot.lane.b32.xlu0 %v54, 1
    %v59 = vpop.permute.xlu0 %58
    %60 = vrot.lane.b32.xlu0 %v55, 1
    %v61 = vpop.permute.xlu0 %60
    %vm64 = vcmask 7168
    %v65 = vsel %vm64, 0.0, %v59
    %v66 = vsel %vm64, 0.0, %v61
    %67 = vrot.lane.b32.xlu0 %v54, 127
    %v68 = vpop.permute.xlu0 %67
    %69 = vrot.lane.b32.xlu0 %v55, 127
    %v70 = vpop.permute.xlu0 %69
    %vm73 = vcmask 121856
    %v74 = vsel %vm73, %v68, 0.0
    %v75 = vsel %vm73, %v70, 0.0
    %s76 = sld [smem:[#allocation7]]
    %v77 = vstv %s76
    %v78 = vadd.f32 %v54, %v77
    %v79 = vadd.f32 %v55, %v77
    %s80 = sld [smem:[#allocation6]]
    %v81 = vstv %s80
    %v82 = vmul.f32 %v81, %v65
    %v83 = vmul.f32 %v81, %v66
    %v84 = vadd.f32 %v78, %v82
    %v85 = vadd.f32 %v79, %v83
    %s86 = sld [smem:[#allocation6 + $0x1]]
    %v87 = vstv %s86
    %v88 = vmul.f32 %v87, %v54
    %v89 = vmul.f32 %v87, %v55
    %v90 = vadd.f32 %v84, %v88
    %v91 = vadd.f32 %v85, %v89
    %s92 = sld [smem:[#allocation6 + $0x2]]
    %v93 = vstv %s92
    %v94 = vmul.f32 %v93, %v74
    %v95 = vmul.f32 %v93, %v75
    %v96 = vadd.f32 %v90, %v94
    %v97 = vadd.f32 %v91, %v95
    %s98 = sld [smem:[#allocation6 + $0x3]]
    %v99 = vstv %s98
    %v100 = vmul.f32 %v99, %v65
    %v101 = vmul.f32 %v99, %v66
    %v104 = vrot.slane %v100, 1
    %v105 = vrot.slane %v101, 1
    %v108 = vadd.f32 %v96, %v104
    %v109 = vadd.f32 %v97, %v105
    %s110 = sld [smem:[#allocation6 + $0x4]]
    %v111 = vstv %s110
    %v112 = vmul.f32 %v111, %v54
    %v113 = vmul.f32 %v111, %v55
    %v116 = vrot.slane %v112, 1
    %v117 = vrot.slane %v113, 1
    %v120 = vadd.f32 %v108, %v116
    %v121 = vadd.f32 %v109, %v117
    %s122 = sld [smem:[#allocation6 + $0x5]]
    %v123 = vstv %s122
    %v124 = vmul.f32 %v123, %v74
    %v125 = vmul.f32 %v123, %v75
    %v128 = vrot.slane %v124, 1
    %v129 = vrot.slane %v125, 1
    %v132 = vadd.f32 %v120, %v128
    %v133 = vadd.f32 %v121, %v129
    %s134 = sld [smem:[#allocation6 + $0x6]]
    %v135 = vstv %s134
    %v136 = vmul.f32 %v135, %v65
    %v137 = vmul.f32 %v135, %v66
    %v140 = vrot.slane %v136, 2
    %v141 = vrot.slane %v137, 2
    %v144 = vadd.f32 %v132, %v140
    %v145 = vadd.f32 %v133, %v141
    %s146 = sld [smem:[#allocation6 + $0x7]]
    %v147 = vstv %s146
    %v148 = vmul.f32 %v147, %v54
    %v149 = vmul.f32 %v147, %v55
    %v152 = vrot.slane %v148, 2
    %v153 = vrot.slane %v149, 2
    %v156 = vadd.f32 %v144, %v152
    %v157 = vadd.f32 %v145, %v153
    %s158 = sld [smem:[#allocation6 + $0x8]]
    %v159 = vstv %s158
    %v160 = vmul.f32 %v159, %v74
    %v161 = vmul.f32 %v159, %v75
    %v164 = vrot.slane %v160, 2
    %v165 = vrot.slane %v161, 2
    %v168 = vadd.f32 %v156, %v164
    %v169 = vadd.f32 %v157, %v165
    %s170 = sld [smem:[#allocation6 + $0x9]]
    %v171 = vstv %s170
    %v172 = vmul.f32 %v171, %v65
    %v173 = vmul.f32 %v171, %v66
    %v176 = vrot.slane %v172, 3
    %v177 = vrot.slane %v173, 3
    %v180 = vadd.f32 %v168, %v176
    %v181 = vadd.f32 %v169, %v177
    %s182 = sld [smem:[#allocation6 + $0xa]]
    %v183 = vstv %s182
    %v184 = vmul.f32 %v183, %v54
    %v185 = vmul.f32 %v183, %v55
    %v188 = vrot.slane %v184, 3
    %v189 = vrot.slane %v185, 3
    %v192 = vadd.f32 %v180, %v188
    %v193 = vadd.f32 %v181, %v189
    %s194 = sld [smem:[#allocation6 + $0xb]]
    %v195 = vstv %s194
    %v196 = vmul.f32 %v195, %v74
    %v197 = vmul.f32 %v195, %v75
    %v200 = vrot.slane %v196, 3
    %v201 = vrot.slane %v197, 3
    %v204 = vadd.f32 %v192, %v200
    %v205 = vadd.f32 %v193, %v201
    %s206 = sld [smem:[#allocation7 + $0x1]]
    %v207 = vstv %s206
    %v208 = vadd.f32 %v54, %v207
    %v209 = vadd.f32 %v55, %v207
    %s210 = sld [smem:[#allocation6 + $0xc]]
    %v211 = vstv %s210
    %v212 = vmul.f32 %v211, %v65
    %v213 = vmul.f32 %v211, %v66
    %v216 = vrot.slane %v212, 7
    %v217 = vrot.slane %v213, 7
    %v220 = vadd.f32 %v208, %v216
    %v221 = vadd.f32 %v209, %v217
    %s222 = sld [smem:[#allocation6 + $0xd]]
    %v223 = vstv %s222
    %v224 = vmul.f32 %v223, %v54
    %v225 = vmul.f32 %v223, %v55
    %v228 = vrot.slane %v224, 7
    %v229 = vrot.slane %v225, 7
    %v232 = vadd.f32 %v220, %v228
    %v233 = vadd.f32 %v221, %v229
    %s234 = sld [smem:[#allocation6 + $0xe]]
    %v235 = vstv %s234
    %v236 = vmul.f32 %v235, %v74
    %v237 = vmul.f32 %v235, %v75
    %v240 = vrot.slane %v236, 7
    %v241 = vrot.slane %v237, 7
    %v244 = vadd.f32 %v232, %v240
    %v245 = vadd.f32 %v233, %v241
    %s246 = sld [smem:[#allocation6 + $0xf]]
    %v247 = vstv %s246
    %v248 = vmul.f32 %v247, %v65
    %v249 = vmul.f32 %v247, %v66
    %v250 = vadd.f32 %v244, %v248
    %v251 = vadd.f32 %v245, %v249
    %s252 = sld [smem:[#allocation6 + $0x10]]
    %v253 = vstv %s252
    %v254 = vmul.f32 %v253, %v54
    %v255 = vmul.f32 %v253, %v55
    %v256 = vadd.f32 %v250, %v254
    %v257 = vadd.f32 %v251, %v255
    %s258 = sld [smem:[#allocation6 + $0x11]]
    %v259 = vstv %s258
    %v260 = vmul.f32 %v259, %v74
    %v261 = vmul.f32 %v259, %v75
    %v262 = vadd.f32 %v256, %v260
    %v263 = vadd.f32 %v257, %v261
    %s264 = sld [smem:[#allocation6 + $0x12]]
    %v265 = vstv %s264
    %v266 = vmul.f32 %v265, %v65
    %v267 = vmul.f32 %v265, %v66
    %v270 = vrot.slane %v266, 1
    %v271 = vrot.slane %v267, 1
    %v274 = vadd.f32 %v262, %v270
    %v275 = vadd.f32 %v263, %v271
    %s276 = sld [smem:[#allocation6 + $0x13]]
    %v277 = vstv %s276
    %v278 = vmul.f32 %v277, %v54
    %v279 = vmul.f32 %v277, %v55
    %v282 = vrot.slane %v278, 1
    %v283 = vrot.slane %v279, 1
    %v286 = vadd.f32 %v274, %v282
    %v287 = vadd.f32 %v275, %v283
    %s288 = sld [smem:[#allocation6 + $0x14]]
    %v289 = vstv %s288
    %v290 = vmul.f32 %v289, %v74
    %v291 = vmul.f32 %v289, %v75
    %v294 = vrot.slane %v290, 1
    %v295 = vrot.slane %v291, 1
    %v298 = vadd.f32 %v286, %v294
    %v299 = vadd.f32 %v287, %v295
    %s300 = sld [smem:[#allocation6 + $0x15]]
    %v301 = vstv %s300
    %v302 = vmul.f32 %v301, %v65
    %v303 = vmul.f32 %v301, %v66
    %v306 = vrot.slane %v302, 2
    %v307 = vrot.slane %v303, 2
    %v310 = vadd.f32 %v298, %v306
    %v311 = vadd.f32 %v299, %v307
    %s312 = sld [smem:[#allocation6 + $0x16]]
    %v313 = vstv %s312
    %v314 = vmul.f32 %v313, %v54
    %v315 = vmul.f32 %v313, %v55
    %v318 = vrot.slane %v314, 2
    %v319 = vrot.slane %v315, 2
    %v322 = vadd.f32 %v310, %v318
    %v323 = vadd.f32 %v311, %v319
    %s324 = sld [smem:[#allocation6 + $0x17]]
    %v325 = vstv %s324
    %v326 = vmul.f32 %v325, %v74
    %v327 = vmul.f32 %v325, %v75
    %v330 = vrot.slane %v326, 2
    %v331 = vrot.slane %v327, 2
    %v334 = vadd.f32 %v322, %v330
    %v335 = vadd.f32 %v323, %v331
    %s336 = sld [smem:[#allocation7 + $0x2]]
    %v337 = vstv %s336
    %v338 = vadd.f32 %v54, %v337
    %v339 = vadd.f32 %v55, %v337
    %s340 = sld [smem:[#allocation6 + $0x18]]
    %v341 = vstv %s340
    %v342 = vmul.f32 %v341, %v65
    %v343 = vmul.f32 %v341, %v66
    %v346 = vrot.slane %v342, 6
    %v347 = vrot.slane %v343, 6
    %v350 = vadd.f32 %v338, %v346
    %v351 = vadd.f32 %v339, %v347
    %s352 = sld [smem:[#allocation6 + $0x19]]
    %v353 = vstv %s352
    %v354 = vmul.f32 %v353, %v54
    %v355 = vmul.f32 %v353, %v55
    %v358 = vrot.slane %v354, 6
    %v359 = vrot.slane %v355, 6
    %v362 = vadd.f32 %v350, %v358
    %v363 = vadd.f32 %v351, %v359
    %s364 = sld [smem:[#allocation6 + $0x1a]]
    %v365 = vstv %s364
    %v366 = vmul.f32 %v365, %v74
    %v367 = vmul.f32 %v365, %v75
    %v370 = vrot.slane %v366, 6
    %v371 = vrot.slane %v367, 6
    %v374 = vadd.f32 %v362, %v370
    %v375 = vadd.f32 %v363, %v371
    %s376 = sld [smem:[#allocation6 + $0x1b]]
    %v377 = vstv %s376
    %v378 = vmul.f32 %v377, %v65
    %v379 = vmul.f32 %v377, %v66
    %v382 = vrot.slane %v378, 7
    %v383 = vrot.slane %v379, 7
    %v386 = vadd.f32 %v374, %v382
    %v387 = vadd.f32 %v375, %v383
    %s388 = sld [smem:[#allocation6 + $0x1c]]
    %v389 = vstv %s388
    %v390 = vmul.f32 %v389, %v54
    %v391 = vmul.f32 %v389, %v55
    %v394 = vrot.slane %v390, 7
    %v395 = vrot.slane %v391, 7
    %v398 = vadd.f32 %v386, %v394
    %v399 = vadd.f32 %v387, %v395
    %s400 = sld [smem:[#allocation6 + $0x1d]]
    %v401 = vstv %s400
    %v402 = vmul.f32 %v401, %v74
    %v403 = vmul.f32 %v401, %v75
    %v406 = vrot.slane %v402, 7
    %v407 = vrot.slane %v403, 7
    %v410 = vadd.f32 %v398, %v406
    %v411 = vadd.f32 %v399, %v407
    %s412 = sld [smem:[#allocation6 + $0x1e]]
    %v413 = vstv %s412
    %v414 = vmul.f32 %v413, %v65
    %v415 = vmul.f32 %v413, %v66
    %v416 = vadd.f32 %v410, %v414
    %v417 = vadd.f32 %v411, %v415
    %s418 = sld [smem:[#allocation6 + $0x1f]]
    %v419 = vstv %s418
    %v420 = vmul.f32 %v419, %v54
    %v421 = vmul.f32 %v419, %v55
    %v422 = vadd.f32 %v416, %v420
    %v423 = vadd.f32 %v417, %v421
    %s424 = sld [smem:[#allocation6 + $0x20]]
    %v425 = vstv %s424
    %v426 = vmul.f32 %v425, %v74
    %v427 = vmul.f32 %v425, %v75
    %v428 = vadd.f32 %v422, %v426
    %v429 = vadd.f32 %v423, %v427
    %s430 = sld [smem:[#allocation6 + $0x21]]
    %v431 = vstv %s430
    %v432 = vmul.f32 %v431, %v65
    %v433 = vmul.f32 %v431, %v66
    %v436 = vrot.slane %v432, 1
    %v437 = vrot.slane %v433, 1
    %v440 = vadd.f32 %v428, %v436
    %v441 = vadd.f32 %v429, %v437
    %s442 = sld [smem:[#allocation6 + $0x22]]
    %v443 = vstv %s442
    %v444 = vmul.f32 %v443, %v54
    %v445 = vmul.f32 %v443, %v55
    %v448 = vrot.slane %v444, 1
    %v449 = vrot.slane %v445, 1
    %v452 = vadd.f32 %v440, %v448
    %v453 = vadd.f32 %v441, %v449
    %s454 = sld [smem:[#allocation6 + $0x23]]
    %v455 = vstv %s454
    %v456 = vmul.f32 %v455, %v74
    %v457 = vmul.f32 %v455, %v75
    %v460 = vrot.slane %v456, 1
    %v461 = vrot.slane %v457, 1
    %v464 = vadd.f32 %v452, %v460
    %v465 = vadd.f32 %v453, %v461
    %s466 = sld [smem:[#allocation7 + $0x3]]
    %v467 = vstv %s466
    %v468 = vadd.f32 %v54, %v467
    %v469 = vadd.f32 %v55, %v467
    %s470 = sld [smem:[#allocation6 + $0x24]]
    %v471 = vstv %s470
    %v472 = vmul.f32 %v471, %v65
    %v473 = vmul.f32 %v471, %v66
    %v476 = vrot.slane %v472, 5
    %v477 = vrot.slane %v473, 5
    %v480 = vadd.f32 %v468, %v476
    %v481 = vadd.f32 %v469, %v477
    %s482 = sld [smem:[#allocation6 + $0x25]]
    %v483 = vstv %s482
    %v484 = vmul.f32 %v483, %v54
    %v485 = vmul.f32 %v483, %v55
    %v488 = vrot.slane %v484, 5
    %v489 = vrot.slane %v485, 5
    %v492 = vadd.f32 %v480, %v488
    %v493 = vadd.f32 %v481, %v489
    %s494 = sld [smem:[#allocation6 + $0x26]]
    %v495 = vstv %s494
    %v496 = vmul.f32 %v495, %v74
    %v497 = vmul.f32 %v495, %v75
    %v500 = vrot.slane %v496, 5
    %v501 = vrot.slane %v497, 5
    %v504 = vadd.f32 %v492, %v500
    %v505 = vadd.f32 %v493, %v501
    %s506 = sld [smem:[#allocation6 + $0x27]]
    %v507 = vstv %s506
    %v508 = vmul.f32 %v507, %v65
    %v509 = vmul.f32 %v507, %v66
    %v512 = vrot.slane %v508, 6
    %v513 = vrot.slane %v509, 6
    %v516 = vadd.f32 %v504, %v512
    %v517 = vadd.f32 %v505, %v513
    %s518 = sld [smem:[#allocation6 + $0x28]]
    %v519 = vstv %s518
    %v520 = vmul.f32 %v519, %v54
    %v521 = vmul.f32 %v519, %v55
    %v524 = vrot.slane %v520, 6
    %v525 = vrot.slane %v521, 6
    %v528 = vadd.f32 %v516, %v524
    %v529 = vadd.f32 %v517, %v525
    %s530 = sld [smem:[#allocation6 + $0x29]]
    %v531 = vstv %s530
    %v532 = vmul.f32 %v531, %v74
    %v533 = vmul.f32 %v531, %v75
    %v536 = vrot.slane %v532, 6
    %v537 = vrot.slane %v533, 6
    %v540 = vadd.f32 %v528, %v536
    %v541 = vadd.f32 %v529, %v537
    %s542 = sld [smem:[#allocation6 + $0x2a]]
    %v543 = vstv %s542
    %v544 = vmul.f32 %v543, %v65
    %v545 = vmul.f32 %v543, %v66
    %v548 = vrot.slane %v544, 7
    %v549 = vrot.slane %v545, 7
    %v552 = vadd.f32 %v540, %v548
    %v553 = vadd.f32 %v541, %v549
    %s554 = sld [smem:[#allocation6 + $0x2b]]
    %v555 = vstv %s554
    %v556 = vmul.f32 %v555, %v54
    %v557 = vmul.f32 %v555, %v55
    %v560 = vrot.slane %v556, 7
    %v561 = vrot.slane %v557, 7
    %v564 = vadd.f32 %v552, %v560
    %v565 = vadd.f32 %v553, %v561
    %s566 = sld [smem:[#allocation6 + $0x2c]]
    %v567 = vstv %s566
    %v568 = vmul.f32 %v567, %v74
    %v569 = vmul.f32 %v567, %v75
    %v572 = vrot.slane %v568, 7
    %v573 = vrot.slane %v569, 7
    %v576 = vadd.f32 %v564, %v572
    %v577 = vadd.f32 %v565, %v573
    %s578 = sld [smem:[#allocation6 + $0x2d]]
    %v579 = vstv %s578
    %v580 = vmul.f32 %v579, %v65
    %v581 = vmul.f32 %v579, %v66
    %v582 = vadd.f32 %v576, %v580
    %v583 = vadd.f32 %v577, %v581
    %s584 = sld [smem:[#allocation6 + $0x2e]]
    %v585 = vstv %s584
    %v586 = vmul.f32 %v585, %v54
    %v587 = vmul.f32 %v585, %v55
    %v588 = vadd.f32 %v582, %v586
    %v589 = vadd.f32 %v583, %v587
    %s590 = sld [smem:[#allocation6 + $0x2f]]
    %v591 = vstv %s590
    %v592 = vmul.f32 %v591, %v74
    %v593 = vmul.f32 %v591, %v75
    %v594 = vadd.f32 %v588, %v592
    %v595 = vadd.f32 %v589, %v593
    %vm596 = vcmask 1040384
    %v597 = vsel %vm596, %v204, %v334
    %v598 = vsel %vm596, %v205, %v335
    %vm599 = vcmask 1041408
    %v600 = vsel %vm599, %v597, %v464
    %v601 = vsel %vm599, %v598, %v465
    %vm602 = vcmask 1042432
    %v603 = vsel %vm602, %v600, %v594
    %v604 = vsel %vm602, %v601, %v595
    %vm605 = vcmask 125952
    %606 = vst.msk [vmem:[#allocation9] sm:$0xf] %vm605, %v603
    %607 = vst.msk [vmem:[#allocation9 + $0x4] sm:$0xf] %vm605, %v604
    // Predicated region
    $region26: #{tpu_custom_call.1} parent=1 // pred_check
      _
    $region27: #{tpu_custom_call.1} parent=1 // pred_check_branch
      %609 = sbr.rel (0) target = $region29
    $region28: #{tpu_custom_call.1} parent=1 // pred_region
      %s611 = ssub.s32 128, 128
      %612 = vsyncadd [#allocation4], %s611
      %s613 = sshll.u32 [#allocation9], 4
      %s614 = int_to_ptr.vmem [resolvable:$true] %s613
      %619 = dma.vmem_to_hbm [thread:$0]  %s614, 128, %s3, [#allocation4], 64, 64, 4
    $region29: #{tpu_custom_call.1} parent=1 // pred_fallthru
      _
    // Predicated region
    $region30: #{tpu_custom_call.1} parent=1 // pred_check
      _
    $region31: #{tpu_custom_call.1} parent=1 // pred_check_branch
      %621 = sbr.rel (0) target = $region33
    $region32: #{tpu_custom_call.1} parent=1 // pred_region
      %622 = dma.done [#allocation4], 128
    $region33: #{tpu_custom_call.1} parent=1 // pred_fallthru
      _
    %623 = vsyncpa [#allocation3], 1
    %624 = vsyncpa [#allocation4], 1
    %625 = vsyncpa [#allocation5], 1
    %626 = vsyncpa [#allocation8], 1

</llo_original>
